<compile_context>
chip_gen: v7x
topology: tpu7x:2x2x1
jax: 0.10.0
libtpu: 0.0.40
codegen_flags: <defaults>
</compile_context>

<pallas_src>
import jax
import jax.numpy as jnp
from jax.experimental import pallas as pl
from jax.experimental.pallas import tpu as pltpu


def _round_up(v, m):
    return (v + m - 1) // m * m


# ----------------------------------------------------------------------------
# Pallas kernel: one grid step == one tile of M rows, ALL actions fused.
#   y = relu(x @ W1cat + b1cat) @ W2bd + b2cat
# ----------------------------------------------------------------------------
def _sf_fused_kernel(x_ref, w1_ref, b1_ref, w2_ref, b2_ref, o_ref):
    # x_ref : (Mt, d)         x tile (streamed over the grid)
    # w1_ref: (d, A*H)        all first-layer weights, concatenated (resident)
    # b1_ref: (1, A*H)
    # w2_ref: (A*H, A*d)      block-diagonal second-layer weights (resident)
    # b2_ref: (1, A*d)
    # o_ref : (Mt, A*d)       lane-dense output tile
    x = x_ref[...]
    h = jnp.dot(x, w1_ref[...], preferred_element_type=jnp.float32) + b1_ref[...]
    h = jnp.maximum(h, 0.0)                                   # ReLU
    y = jnp.dot(h, w2_ref[...], preferred_element_type=jnp.float32) + b2_ref[...]
    o_ref[...] = y.astype(o_ref.dtype)


def sf_per_action_forward(x, w1, b1, w2, b2, *, block_m=1024):
    """
    x  : (N, S, d)   float32
    w1 : (A, d, H)   first Linear weights (in_dim x out_dim layout)
    b1 : (A, 1, H)
    w2 : (A, H, d)   second Linear weights
    b2 : (A, 1, d)
    returns (N, S, A, d)   == torch.cat([fn_a(x).unsqueeze(-2) for a], dim=-2)
    """
    N, S, d = x.shape
    A, _, H = w1.shape
    M = N * S

    # --- fuse the A per-action MLPs into one pair of matmuls -----------------
    # W1cat : (d, A*H)   -- per-action first-layer weights side by side
    # W2bd  : (A*H, A*d) -- block-diagonal; off-diagonal blocks exactly zero
    #                       (eye entries are exact 0/1 so no action leakage)
    w1cat = jnp.transpose(w1, (1, 0, 2)).reshape(d, A * H)
    b1cat = b1.reshape(1, A * H)
    eye = jnp.eye(A, dtype=w2.dtype)
    w2bd = jnp.einsum("ahd,ab->ahbd", w2, eye).reshape(A * H, A * d)
    b2cat = b2.reshape(1, A * d)

    # --- tile the flattened batch dim; pad to a multiple of the tile ---------
    mt = min(block_m, _round_up(M, 8))
    m_pad = _round_up(M, mt)
    x2 = x.reshape(M, d)
    if m_pad != M:
        x2 = jnp.pad(x2, ((0, m_pad - M), (0, 0)))

    flops = 2 * m_pad * (d * A * H + (A * H) * (A * d))
    bytes_accessed = 4 * (m_pad * d + d * A * H + A * H
                          + A * H * A * d + A * d + m_pad * A * d)

    out = pl.pallas_call(
        _sf_fused_kernel,
        out_shape=jax.ShapeDtypeStruct((m_pad, A * d), x.dtype),
        grid_spec=pltpu.PrefetchScalarGridSpec(
            num_scalar_prefetch=0,
            grid=(m_pad // mt,),
            in_specs=[
                pl.BlockSpec((mt, d), lambda m: (m, 0)),          # x tile (streamed)
                pl.BlockSpec((d, A * H), lambda m: (0, 0)),       # W1cat (resident)
                pl.BlockSpec((1, A * H), lambda m: (0, 0)),       # b1cat (resident)
                pl.BlockSpec((A * H, A * d), lambda m: (0, 0)),   # W2bd  (resident)
                pl.BlockSpec((1, A * d), lambda m: (0, 0)),       # b2cat (resident)
            ],
            out_specs=pl.BlockSpec((mt, A * d), lambda m: (m, 0)),
        ),
        compiler_params=pltpu.CompilerParams(
            dimension_semantics=("parallel",),        # M-tile axis: megacore split
            vmem_limit_bytes=32 * 1024 * 1024,        # safe on v5e/v6e/v7x
        ),
        cost_estimate=pl.CostEstimate(
            flops=flops, transcendentals=0, bytes_accessed=bytes_accessed),
    )(x2, w1cat, b1cat, w2bd, b2cat)                              # (m_pad, A*d)

    # Columns are already ordered [action, feature] -> reshape is free.
    return out[:M].reshape(N, S, A, d)


# ----------------------------------------------------------------------------
# Deterministic parameter construction (mirrors nn.Linear shapes of
# SF_Function with sf_hidden_sizes=[H], stacked over num_actions).
# ----------------------------------------------------------------------------
def init_params(key, feature_dim, num_actions, hidden):
    k1, k2, k3, k4 = jax.random.split(key, 4)
    scale1 = 1.0 / jnp.sqrt(feature_dim)
    scale2 = 1.0 / jnp.sqrt(hidden)
    w1 = jax.random.uniform(k1, (num_actions, feature_dim, hidden),
                            jnp.float32, -scale1, scale1)
    b1 = jax.random.uniform(k2, (num_actions, 1, hidden),
                            jnp.float32, -scale1, scale1)
    w2 = jax.random.uniform(k3, (num_actions, hidden, feature_dim),
                            jnp.float32, -scale2, scale2)
    b2 = jax.random.uniform(k4, (num_actions, 1, feature_dim),
                            jnp.float32, -scale2, scale2)
    return w1, b1, w2, b2


def reference_forward(x, w1, b1, w2, b2):
    """Pure-JAX reference of the PyTorch forward for correctness check."""
    h = jnp.maximum(jnp.einsum("nsd,adh->nsah", x, w1) + b1[:, 0][None, None], 0.0)
    y = jnp.einsum("nsah,ahd->nsad", h, w2) + b2[:, 0][None, None]
    return y


if __name__ == "__main__":
    feature_dim = 32
    num_actions = 4
    hidden = 64            # sf_hidden_sizes = [64]
    N, S = 2, 8            # x: (N, *, d) with * = S  ->  M = 16 rows

    key = jax.random.PRNGKey(0)
    kx, kp = jax.random.split(key)
    x = jax.random.normal(kx, (N, S, feature_dim), jnp.float32)
    w1, b1, w2, b2 = init_params(kp, feature_dim, num_actions, hidden)

    out = sf_per_action_forward(x, w1, b1, w2, b2)
    out = jax.block_until_ready(out)

    ref = reference_forward(x, w1, b1, w2, b2)
    assert out.shape == (N, S, num_actions, feature_dim), out.shape
    assert jnp.allclose(out, ref, atol=1e-5, rtol=1e-5), "mismatch vs reference"

    print("KERNEL_OK")
</pallas_src>

<mosaic_0001>
module attributes {stable_mosaic.version = 11 : i64} {
  func.func @_sf_fused_kernel(%arg0: i32, %arg1: memref<16x32xf32, #tpu.memory_space<vmem>>, %arg2: memref<32x256xf32, #tpu.memory_space<vmem>>, %arg3: memref<1x256xf32, #tpu.memory_space<vmem>>, %arg4: memref<256x128xf32, #tpu.memory_space<vmem>>, %arg5: memref<1x128xf32, #tpu.memory_space<vmem>>, %arg6: memref<16x128xf32, #tpu.memory_space<vmem>>) attributes {dimension_semantics = [#tpu.dimension_semantics<parallel>], iteration_bounds = array<i64: 1>, scalar_prefetch = 0 : i64, scratch_operands = 0 : i64, tpu.core_type = #tpu.core_type<tc>, window_params = [{transform_indices = @transform_0, window_bounds = array<i64: 16, 32>}, {pipeline_mode = #tpu.pipeline_mode<synchronous>, transform_indices = @transform_1, window_bounds = array<i64: 32, 256>}, {pipeline_mode = #tpu.pipeline_mode<synchronous>, transform_indices = @transform_2, window_bounds = array<i64: 1, 256>}, {pipeline_mode = #tpu.pipeline_mode<synchronous>, transform_indices = @transform_3, window_bounds = array<i64: 256, 128>}, {pipeline_mode = #tpu.pipeline_mode<synchronous>, transform_indices = @transform_4, window_bounds = array<i64: 1, 128>}, {transform_indices = @transform_5, window_bounds = array<i64: 16, 128>}]} {
    %c0 = arith.constant 0 : index
    %c0_0 = arith.constant 0 : index
    %0 = vector.load %arg1[%c0, %c0_0] : memref<16x32xf32, #tpu.memory_space<vmem>>, vector<16x32xf32>
    %c0_1 = arith.constant 0 : index
    %c0_2 = arith.constant 0 : index
    %1 = vector.load %arg2[%c0_1, %c0_2] : memref<32x256xf32, #tpu.memory_space<vmem>>, vector<32x256xf32>
    %cst = arith.constant dense<0.000000e+00> : vector<16x256xf32>
    %2 = tpu.matmul %0, %1, %cst {dimension_numbers = #tpu.dot_dimension_numbers<[1], [0], [0], [1], [0, 0, 1, 1], [], []>} : vector<16x32xf32>, vector<32x256xf32>, vector<16x256xf32> -> vector<16x256xf32>
    %c0_3 = arith.constant 0 : index
    %c0_4 = arith.constant 0 : index
    %3 = vector.load %arg3[%c0_3, %c0_4] : memref<1x256xf32, #tpu.memory_space<vmem>>, vector<1x256xf32>
    %4 = vector.broadcast %3 : vector<1x256xf32> to vector<16x256xf32>
    %5 = arith.addf %2, %4 : vector<16x256xf32>
    %cst_5 = arith.constant 0.000000e+00 : f32
    %6 = vector.broadcast %cst_5 : f32 to vector<16x256xf32>
    %7 = arith.maximumf %5, %6 : vector<16x256xf32>
    %c0_6 = arith.constant 0 : index
    %c0_7 = arith.constant 0 : index
    %8 = vector.load %arg4[%c0_6, %c0_7] : memref<256x128xf32, #tpu.memory_space<vmem>>, vector<256x128xf32>
    %cst_8 = arith.constant dense<0.000000e+00> : vector<16x128xf32>
    %9 = tpu.matmul %7, %8, %cst_8 {dimension_numbers = #tpu.dot_dimension_numbers<[1], [0], [0], [1], [0, 0, 1, 1], [], []>} : vector<16x256xf32>, vector<256x128xf32>, vector<16x128xf32> -> vector<16x128xf32>
    %c0_9 = arith.constant 0 : index
    %c0_10 = arith.constant 0 : index
    %10 = vector.load %arg5[%c0_9, %c0_10] : memref<1x128xf32, #tpu.memory_space<vmem>>, vector<1x128xf32>
    %11 = vector.broadcast %10 : vector<1x128xf32> to vector<16x128xf32>
    %12 = arith.addf %9, %11 : vector<16x128xf32>
    %c0_11 = arith.constant 0 : index
    %c0_12 = arith.constant 0 : index
    %13 = vector.load %arg6[%c0_11, %c0_12] : memref<16x128xf32, #tpu.memory_space<vmem>>, vector<16x128xf32>
    tpu.vector_store %arg6[%c0_11, %c0_12], %12 {strides = array<i32>} : memref<16x128xf32, #tpu.memory_space<vmem>>, vector<16x128xf32>,
    return
  }
  func.func @transform_0(%arg0: i32) -> (i32, i32) {
    %c0_i32 = arith.constant 0 : i32
    %c0_i32_0 = arith.constant 0 : i32
    return %arg0, %c0_i32 : i32, i32
  }
  func.func @transform_1(%arg0: i32) -> (i32, i32) {
    %c0_i32 = arith.constant 0 : i32
    %c0_i32_0 = arith.constant 0 : i32
    %c0_i32_1 = arith.constant 0 : i32
    return %c0_i32, %c0_i32_0 : i32, i32
  }
  func.func @transform_2(%arg0: i32) -> (i32, i32) {
    %c0_i32 = arith.constant 0 : i32
    %c0_i32_0 = arith.constant 0 : i32
    %c0_i32_1 = arith.constant 0 : i32
    return %c0_i32, %c0_i32_0 : i32, i32
  }
  func.func @transform_3(%arg0: i32) -> (i32, i32) {
    %c0_i32 = arith.constant 0 : i32
    %c0_i32_0 = arith.constant 0 : i32
    %c0_i32_1 = arith.constant 0 : i32
    return %c0_i32, %c0_i32_0 : i32, i32
  }
  func.func @transform_4(%arg0: i32) -> (i32, i32) {
    %c0_i32 = arith.constant 0 : i32
    %c0_i32_0 = arith.constant 0 : i32
    %c0_i32_1 = arith.constant 0 : i32
    return %c0_i32, %c0_i32_0 : i32, i32
  }
  func.func @transform_5(%arg0: i32) -> (i32, i32) {
    %c0_i32 = arith.constant 0 : i32
    %c0_i32_0 = arith.constant 0 : i32
    return %arg0, %c0_i32 : i32, i32
  }
}

</mosaic_0001>

<llo_original>
// kernel: tpu_custom_call.1
$region0: #{tpu_custom_call.1}
  #allocation0 [shape = 'u32[]', space=smem, size = 0x4, offset = 0x4, fixed_abs, tag = 'smem constant byte address 0x4 - core index']
  #allocation1 [shape = 'u32[144,128]{1,0:T(1,128)}', space=vmem, size = 0x12000, scoped, tag = 'internal scratch']
  %s0 = inlined_call_operand.hbm [shape: f32[16,32], index: 0, kind: input, shape index: {}]
  %s1 = inlined_call_operand.hbm [shape: f32[32,256], index: 1, kind: input, shape index: {}]
  %s2 = inlined_call_operand.vmem [shape: f32[1,256], index: 2, kind: input, shape index: {}]
  %s3 = inlined_call_operand.hbm [shape: f32[256,128], index: 3, kind: input, shape index: {}]
  %s4 = inlined_call_operand.vmem [shape: f32[1,128], index: 4, kind: input, shape index: {}]
  %s5 = inlined_call_operand.hbm [shape: f32[16,128], index: 5, kind: output, shape index: {}]
  %s6 = sld [smem:[#allocation0]]
  $region42: #{tpu_custom_call.1} parent=0
    _
  %s8 = ssub.s32 1, %s6
  %s9 = scalar_select 0, %s8, %s6
  $region1: #{tpu_custom_call.1} parent=0
    #allocation2 [shape = 'u8[8192]{0}', space=vmem, size = 0x2000, scoped, tag = 'input window, operand 0, single buffered']
    #allocation3 [shape = 's32[1]{0}', space=sflag, size = 0x4, scoped, tag = 'scoped memory for tpu_custom_call.1']
    #allocation4 [shape = 's32[1]{0}', space=sflag, size = 0x4, scoped, tag = 'scoped memory for tpu_custom_call.1']
    #allocation5 [shape = 'u8[32768]{0}', space=vmem, size = 0x8000, scoped, tag = 'input window, operand 1, single buffered']
    #allocation6 [shape = 's32[1]{0}', space=sflag, size = 0x4, scoped, tag = 'scoped memory for tpu_custom_call.1']
    #allocation7 [shape = 'u8[131072]{0}', space=vmem, size = 0x20000, scoped, tag = 'input window, operand 3, single buffered']
    #allocation8 [shape = 'u8[8192]{0}', space=vmem, size = 0x2000, scoped, tag = 'output window, operand 0, single buffered']
    %10 = vsyncpa [#allocation3], 0
    %11 = vsyncpa [#allocation6], 0
    %12 = vsyncpa [#allocation4], 0
    // Predicated region
    $region2: #{tpu_custom_call.1} parent=1 // pred_check
      _
    $region3: #{tpu_custom_call.1} parent=1 // pred_check_branch
      %14 = sbr.rel (0) target = $region5
    $region4: #{tpu_custom_call.1} parent=1 // pred_region
      %s16 = ssub.s32 256, 256
      %17 = vsyncadd [#allocation3], %s16
      %s18 = sshll.u32 [#allocation2], 4
      %s19 = int_to_ptr.vmem [resolvable:$true] %s18
      %24 = dma.hbm_to_vmem [thread:$0]  %s0, 256, %s19, [#allocation3], 128, 128, 8
    $region5: #{tpu_custom_call.1} parent=1 // pred_fallthru
      _
    // Predicated region
    $region6: #{tpu_custom_call.1} parent=1 // pred_check
      _
    $region7: #{tpu_custom_call.1} parent=1 // pred_check_branch
      %26 = sbr.rel (0) target = $region9
    $region8: #{tpu_custom_call.1} parent=1 // pred_region
      %s28 = ssub.s32 1024, 1024
      %29 = vsyncadd [#allocation6], %s28
      %s30 = sshll.u32 [#allocation5], 4
      %s31 = int_to_ptr.vmem [resolvable:$true] %s30
      %36 = dma.hbm_to_vmem [thread:$0]  %s1, 1024, %s31, [#allocation6], 256, 256, 16
    $region9: #{tpu_custom_call.1} parent=1 // pred_fallthru
      _
    // Predicated region
    $region10: #{tpu_custom_call.1} parent=1 // pred_check
      _
    $region11: #{tpu_custom_call.1} parent=1 // pred_check_branch
      %38 = sbr.rel (0) target = $region13
    $region12: #{tpu_custom_call.1} parent=1 // pred_region
      _
    $region13: #{tpu_custom_call.1} parent=1 // pred_fallthru
      _
    // Predicated region
    $region14: #{tpu_custom_call.1} parent=1 // pred_check
      _
    $region15: #{tpu_custom_call.1} parent=1 // pred_check_branch
      %40 = sbr.rel (0) target = $region17
    $region16: #{tpu_custom_call.1} parent=1 // pred_region
      %s42 = ssub.s32 4096, 4096
      %43 = vsyncadd [#allocation6], %s42
      %s44 = sshll.u32 [#allocation7], 4
      %s45 = int_to_ptr.vmem [resolvable:$true] %s44
      %50 = dma.hbm_to_vmem [thread:$0]  %s3, 4096, %s45, [#allocation6], 128, 128, 8
    $region17: #{tpu_custom_call.1} parent=1 // pred_fallthru
      _
    // Predicated region
    $region18: #{tpu_custom_call.1} parent=1 // pred_check
      _
    $region19: #{tpu_custom_call.1} parent=1 // pred_check_branch
      %52 = sbr.rel (0) target = $region21
    $region20: #{tpu_custom_call.1} parent=1 // pred_region
      _
    $region21: #{tpu_custom_call.1} parent=1 // pred_fallthru
      _
    // Predicated region
    $region22: #{tpu_custom_call.1} parent=1 // pred_check
      _
    $region23: #{tpu_custom_call.1} parent=1 // pred_check_branch
      %54 = sbr.rel (0) target = $region25
    $region24: #{tpu_custom_call.1} parent=1 // pred_region
      %55 = dma.done [#allocation3], 256
    $region25: #{tpu_custom_call.1} parent=1 // pred_fallthru
      _
    // Predicated region
    $region26: #{tpu_custom_call.1} parent=1 // pred_check
      _
    $region27: #{tpu_custom_call.1} parent=1 // pred_check_branch
      %57 = sbr.rel (0) target = $region29
    $region28: #{tpu_custom_call.1} parent=1 // pred_region
      %58 = dma.done [#allocation6], 1024
    $region29: #{tpu_custom_call.1} parent=1 // pred_fallthru
      _
    // Predicated region
    $region30: #{tpu_custom_call.1} parent=1 // pred_check
      _
    $region31: #{tpu_custom_call.1} parent=1 // pred_check_branch
      %60 = sbr.rel (0) target = $region33
    $region32: #{tpu_custom_call.1} parent=1 // pred_region
      %61 = dma.done [#allocation6], 4096
    $region33: #{tpu_custom_call.1} parent=1 // pred_fallthru
      _
    %v62 = vld [vmem:[#allocation2] sm:$0xff]
    %v63 = vld [vmem:[#allocation2 + $0x8] sm:$0xff]
    %v64 = vld [vmem:[#allocation5] sm:$0xff]
    %v65 = vld [vmem:[#allocation5 + $0x8] sm:$0xff]
    %v66 = vld [vmem:[#allocation5 + $0x10] sm:$0xff]
    %v67 = vld [vmem:[#allocation5 + $0x18] sm:$0xff]
    %v68 = vld [vmem:[#allocation5 + $0x20] sm:$0xff]
    %v69 = vld [vmem:[#allocation5 + $0x28] sm:$0xff]
    %v70 = vld [vmem:[#allocation5 + $0x30] sm:$0xff]
    %v71 = vld [vmem:[#allocation5 + $0x38] sm:$0xff]
    %v72 = vld [vmem:[%s2] sm:$0x3]
    %v74 = vlaneseq
    %v75 = vshrl.u32 %v74, 7
    %v76 = vsub.s32 0, %v75
    %v77 = vrot.slane %v72, %v76
    %v78 = vlaneseq
    %v79 = vshrl.u32 %v78, 7
    %v80 = vsub.s32 1, %v79
    %v81 = vrot.slane %v72, %v80
    %vm84 = vcmask 261120
    %v86 = vsel %vm84, %v62, 0
    %v89 = vsel %vm84, %v63, 0
    %91 = vmatprep.subr.mxu0 %v65
    %92 = vmatpush1.msra.mxu0 %v64
    %93 = vmatprep.subr.mxu0 %v67
    %94 = vmatpush1.msra.mxu0 %v66
    %95 = vmatprep.subr.mxu0 %v69
    %96 = vmatpush1.msra.mxu0 %v68
    %97 = vmatprep.subr.mxu0 %v71
    %98 = vmatpush1.msra.mxu0 %v70
    %99 = vmatprep.subr.mxu0 0.0
    %100 = vmatpush1.msra.mxu0 0.0
    %101 = vmatprep.subr.mxu0 0.0
    %102 = vmatpush1.msra.mxu0 0.0
    %103 = vmatprep.subr.mxu0 0.0
    %104 = vmatpush1.msra.mxu0 0.0
    %105 = vmatprep.subr.mxu0 0.0
    %106 = vmatpush1.msra.mxu0 0.0
    %107 = vmatprep.subr.mxu0 0.0
    %108 = vmatpush1.msra.mxu0 0.0
    %109 = vmatprep.subr.mxu0 0.0
    %110 = vmatpush1.msra.mxu0 0.0
    %111 = vmatprep.subr.mxu0 0.0
    %112 = vmatpush1.msra.mxu0 0.0
    %113 = vmatprep.subr.mxu0 0.0
    %114 = vmatpush1.msra.mxu0 0.0
    %115 = vmatprep.subr.mxu0 0.0
    %116 = vmatpush1.msra.mxu0 0.0
    %117 = vmatprep.subr.mxu0 0.0
    %118 = vmatpush1.msra.mxu0 0.0
    %119 = vmatprep.subr.mxu0 0.0
    %120 = vmatpush1.msra.mxu0 0.0
    %121 = vmatprep.subr.mxu0 0.0
    %122 = vmatpush1.msra.mxu0 0.0
    %123 = vmatprep.subr.mxu0 0.0
    %124 = vmatpush1.msra.mxu0 0.0
    %125 = vmatprep.subr.mxu0 0.0
    %126 = vmatpush1.msra.mxu0 0.0
    %127 = vmatprep.subr.mxu0 0.0
    %128 = vmatpush1.msra.mxu0 0.0
    %129 = vmatprep.subr.mxu0 0.0
    %130 = vmatpush1.msra.mxu0 0.0
    %131 = vmatprep.subr.mxu0 0.0
    %132 = vmatpush1.msra.mxu0 0.0
    %133 = vmatprep.subr.mxu0 0.0
    %134 = vmatpush1.msra.mxu0 0.0
    %135 = vmatprep.subr.mxu0 0.0
    %136 = vmatpush1.msra.mxu0 0.0
    %137 = vmatprep.subr.mxu0 0.0
    %138 = vmatpush1.msra.mxu0 0.0
    %139 = vmatprep.subr.mxu0 0.0
    %140 = vmatpush1.msra.mxu0 0.0
    %141 = vmatprep.subr.mxu0 0.0
    %142 = vmatpush1.msra.mxu0 0.0
    %143 = vmatprep.subr.mxu0 0.0
    %144 = vmatpush1.msra.mxu0 0.0
    %145 = vmatprep.subr.mxu0 0.0
    %146 = vmatpush1.msra.mxu0 0.0
    %147 = vmatprep.subr.mxu0 0.0
    %148 = vmatpush1.msra.mxu0 0.0
    %149 = vmatprep.subr.mxu0 0.0
    %150 = vmatpush1.msra.mxu0 0.0
    %151 = vmatprep.subr.mxu0 0.0
    %152 = vmatpush1.msra.mxu0 0.0
    %153 = vmatprep.subr.mxu0 0.0
    %154 = vmatpush1.msra.mxu0 0.0
    %155 = vmatprep.mubr.f32.mxu0 0.0
    %156 = vmatmul.mubr.f32.gmra.mrb[0].mxu0 %v86
    %v157 = vpop.f32.mrb[0].mxu0
    %v158 = vadd.f32 %v77, %v157
    %v159 = vpop.f32.mrb[0].mxu0
    %v160 = vadd.f32 %v81, %v159
    %161 = vmatprep.mubr.f32.mxu0 0.0
    %162 = vmatmul.mubr.f32.gmra.mrb[0].mxu0 %v89
    %v163 = vpop.f32.mrb[0].mxu0
    %v164 = vadd.f32 %v77, %v163
    %v165 = vpop.f32.mrb[0].mxu0
    %v166 = vadd.f32 %v81, %v165
    %167 = vdwg.mxu0
    %v168 = vmax.f32 %v158, 0.0
    %v169 = vmax.f32 %v160, 0.0
    %v170 = vmax.f32 %v164, 0.0
    %v171 = vmax.f32 %v166, 0.0
    %v172 = vld [vmem:[#allocation7] sm:$0xff]
    %v173 = vld [vmem:[#allocation7 + $0x8] sm:$0xff]
    %v174 = vld [vmem:[#allocation7 + $0x10] sm:$0xff]
    %v175 = vld [vmem:[#allocation7 + $0x18] sm:$0xff]
    %v176 = vld [vmem:[#allocation7 + $0x20] sm:$0xff]
    %v177 = vld [vmem:[#allocation7 + $0x28] sm:$0xff]
    %v178 = vld [vmem:[#allocation7 + $0x30] sm:$0xff]
    %v179 = vld [vmem:[#allocation7 + $0x38] sm:$0xff]
    %v180 = vld [vmem:[#allocation7 + $0x40] sm:$0xff]
    %v181 = vld [vmem:[#allocation7 + $0x48] sm:$0xff]
    %v182 = vld [vmem:[#allocation7 + $0x50] sm:$0xff]
    %v183 = vld [vmem:[#allocation7 + $0x58] sm:$0xff]
    %v184 = vld [vmem:[#allocation7 + $0x60] sm:$0xff]
    %v185 = vld [vmem:[#allocation7 + $0x68] sm:$0xff]
    %v186 = vld [vmem:[#allocation7 + $0x70] sm:$0xff]
    %v187 = vld [vmem:[#allocation7 + $0x78] sm:$0xff]
    %v188 = vld [vmem:[#allocation7 + $0x80] sm:$0xff]
    %v189 = vld [vmem:[#allocation7 + $0x88] sm:$0xff]
    %v190 = vld [vmem:[#allocation7 + $0x90] sm:$0xff]
    %v191 = vld [vmem:[#allocation7 + $0x98] sm:$0xff]
    %v192 = vld [vmem:[#allocation7 + $0xa0] sm:$0xff]
    %v193 = vld [vmem:[#allocation7 + $0xa8] sm:$0xff]
    %v194 = vld [vmem:[#allocation7 + $0xb0] sm:$0xff]
    %v195 = vld [vmem:[#allocation7 + $0xb8] sm:$0xff]
    %v196 = vld [vmem:[#allocation7 + $0xc0] sm:$0xff]
    %v197 = vld [vmem:[#allocation7 + $0xc8] sm:$0xff]
    %v198 = vld [vmem:[#allocation7 + $0xd0] sm:$0xff]
    %v199 = vld [vmem:[#allocation7 + $0xd8] sm:$0xff]
    %v200 = vld [vmem:[#allocation7 + $0xe0] sm:$0xff]
    %v201 = vld [vmem:[#allocation7 + $0xe8] sm:$0xff]
    %v202 = vld [vmem:[#allocation7 + $0xf0] sm:$0xff]
    %v203 = vld [vmem:[#allocation7 + $0xf8] sm:$0xff]
    %v204 = vld [vmem:[%s4] sm:$0x1]
    %v206 = vlaneseq
    %v207 = vshrl.u32 %v206, 7
    %v208 = vsub.s32 0, %v207
    %v209 = vrot.slane %v204, %v208
    %211 = vmatprep.subr.mxu0 0.0
    %212 = vmatpush1.msra.mxu0 %v172
    %213 = vmatprep.subr.mxu0 0.0
    %214 = vmatpush1.msra.mxu0 %v173
    %215 = vmatprep.subr.mxu0 0.0
    %216 = vmatpush1.msra.mxu0 %v174
    %217 = vmatprep.subr.mxu0 0.0
    %218 = vmatpush1.msra.mxu0 %v175
    %219 = vmatprep.subr.mxu0 0.0
    %220 = vmatpush1.msra.mxu0 %v176
    %221 = vmatprep.subr.mxu0 0.0
    %222 = vmatpush1.msra.mxu0 %v177
    %223 = vmatprep.subr.mxu0 0.0
    %224 = vmatpush1.msra.mxu0 %v178
    %225 = vmatprep.subr.mxu0 0.0
    %226 = vmatpush1.msra.mxu0 %v179
    %227 = vmatprep.subr.mxu0 0.0
    %228 = vmatpush1.msra.mxu0 %v180
    %229 = vmatprep.subr.mxu0 0.0
    %230 = vmatpush1.msra.mxu0 %v181
    %231 = vmatprep.subr.mxu0 0.0
    %232 = vmatpush1.msra.mxu0 %v182
    %233 = vmatprep.subr.mxu0 0.0
    %234 = vmatpush1.msra.mxu0 %v183
    %235 = vmatprep.subr.mxu0 0.0
    %236 = vmatpush1.msra.mxu0 %v184
    %237 = vmatprep.subr.mxu0 0.0
    %238 = vmatpush1.msra.mxu0 %v185
    %239 = vmatprep.subr.mxu0 0.0
    %240 = vmatpush1.msra.mxu0 %v186
    %241 = vmatprep.subr.mxu0 0.0
    %242 = vmatpush1.msra.mxu0 %v187
    %243 = vmatprep.subr.mxu0 0.0
    %244 = vmatpush1.msra.mxu0 %v188
    %245 = vmatprep.subr.mxu0 0.0
    %246 = vmatpush1.msra.mxu0 %v189
    %247 = vmatprep.subr.mxu0 0.0
    %248 = vmatpush1.msra.mxu0 %v190
    %249 = vmatprep.subr.mxu0 0.0
    %250 = vmatpush1.msra.mxu0 %v191
    %251 = vmatprep.subr.mxu0 0.0
    %252 = vmatpush1.msra.mxu0 %v192
    %253 = vmatprep.subr.mxu0 0.0
    %254 = vmatpush1.msra.mxu0 %v193
    %255 = vmatprep.subr.mxu0 0.0
    %256 = vmatpush1.msra.mxu0 %v194
    %257 = vmatprep.subr.mxu0 0.0
    %258 = vmatpush1.msra.mxu0 %v195
    %259 = vmatprep.subr.mxu0 0.0
    %260 = vmatpush1.msra.mxu0 %v196
    %261 = vmatprep.subr.mxu0 0.0
    %262 = vmatpush1.msra.mxu0 %v197
    %263 = vmatprep.subr.mxu0 0.0
    %264 = vmatpush1.msra.mxu0 %v198
    %265 = vmatprep.subr.mxu0 0.0
    %266 = vmatpush1.msra.mxu0 %v199
    %267 = vmatprep.subr.mxu0 0.0
    %268 = vmatpush1.msra.mxu0 %v200
    %269 = vmatprep.subr.mxu0 0.0
    %270 = vmatpush1.msra.mxu0 %v201
    %271 = vmatprep.subr.mxu0 0.0
    %272 = vmatpush1.msra.mxu0 %v202
    %273 = vmatprep.subr.mxu0 0.0
    %274 = vmatpush1.msra.mxu0 %v203
    %275 = vmatprep.mubr.f32.mxu0 %v169
    %276 = vmatmul.mubr.f32.gmra.mrb[0].mxu0 %v168
    %v277 = vpop.f32.mrb[0].mxu0
    %v278 = vadd.f32 %v209, %v277
    %v279 = vpop.f32.mrb[0].mxu0
    %280 = vmatprep.mubr.f32.mxu0 %v171
    %281 = vmatmul.mubr.f32.gmra.mrb[0].mxu0 %v170
    %v282 = vpop.f32.mrb[0].mxu0
    %v283 = vadd.f32 %v209, %v282
    %v284 = vpop.f32.mrb[0].mxu0
    %285 = vdwg.mxu0
    %286 = vst [vmem:[#allocation8] sm:$0xff] %v278
    %287 = vst [vmem:[#allocation8 + $0x8] sm:$0xff] %v283
    // Predicated region
    $region34: #{tpu_custom_call.1} parent=1 // pred_check
      _
    $region35: #{tpu_custom_call.1} parent=1 // pred_check_branch
      %289 = sbr.rel (0) target = $region37
    $region36: #{tpu_custom_call.1} parent=1 // pred_region
      %s291 = ssub.s32 256, 256
      %292 = vsyncadd [#allocation4], %s291
      %s293 = sshll.u32 [#allocation8], 4
      %s294 = int_to_ptr.vmem [resolvable:$true] %s293
      %299 = dma.vmem_to_hbm [thread:$0]  %s294, 256, %s5, [#allocation4], 128, 128, 8
    $region37: #{tpu_custom_call.1} parent=1 // pred_fallthru
      _
    // Predicated region
    $region38: #{tpu_custom_call.1} parent=1 // pred_check
      _
    $region39: #{tpu_custom_call.1} parent=1 // pred_check_branch
      %301 = sbr.rel (0) target = $region41
    $region40: #{tpu_custom_call.1} parent=1 // pred_region
      %302 = dma.done [#allocation4], 256
    $region41: #{tpu_custom_call.1} parent=1 // pred_fallthru
      _
    %303 = vsyncpa [#allocation3], 1
    %304 = vsyncpa [#allocation6], 1
    %305 = vsyncpa [#allocation4], 1

</llo_original>
